<compile_context>
chip_gen: v6e
topology: v6e:2x2x1
jax: 0.10.0
libtpu: 0.0.40
codegen_flags: <defaults>
</compile_context>

<pallas_src>
import numpy as np
import jax
import jax.numpy as jnp
from jax import lax
from jax.experimental import pallas as pl
from jax.experimental.pallas import tpu as pltpu

FCS1, FCS2, FCS3, FC4 = 50, 100, 4, 24
LN_EPS = 1e-5
DEFAULT_TB = 2048            # batch-tile rows (sweep 2048-4096 for huge batches)
OUT_LANES = 128              # lane-dense output block width
VMEM_LIMIT_BYTES = 32 * 1024 * 1024


def _cdiv(a, b):
    return -(-a // b)


def _round_up(x, m):
    return ((x + m - 1) // m) * m


def _choose_tiling(batch, tb_max):
    """Pick (TB, padded_batch) so grid steps are few but >= 2 for v7x."""
    b8 = _round_up(max(batch, 1), 8)
    n = _cdiv(b8, tb_max)
    if n < 2 and b8 >= 16:
        n = 2                 # give both v7x TensorCores a tile; no-op on v5e/v6e
    tb = _round_up(_cdiv(b8, n), 8)
    bp = _round_up(b8, tb)
    return tb, bp


def _ln_relu(x):
    # PyTorch LayerNorm (biased variance, eps inside sqrt) followed by ReLU.
    # rsqrt rides the EUP slot; the remaining multiply rides the VPU.
    mu = jnp.mean(x, axis=-1, keepdims=True)
    var = jnp.mean((x - mu) ** 2, axis=-1, keepdims=True)
    y = (x - mu) * lax.rsqrt(var + LN_EPS)
    return jnp.maximum(y, 0.0)


def _make_kernel(state_size):
    def kernel(sa_ref,
               w1_ref, b1_ref, w2_ref, b2_ref, w3_ref, b3_ref,
               w4_ref, b4_ref, w5r_ref, b5_ref,
               out_ref, cat_ref):
        sa = sa_ref[...]
        states = sa[:, :state_size]        # static lane slices of the merged stream
        actions = sa[:, state_size:]

        # fcs1 / fcs2 / fcs3
        x = jnp.dot(states, w1_ref[...], preferred_element_type=jnp.float32) + b1_ref[...]
        x = _ln_relu(x)
        x = jnp.dot(x, w2_ref[...], preferred_element_type=jnp.float32) + b2_ref[...]
        x = _ln_relu(x)
        x = jnp.dot(x, w3_ref[...], preferred_element_type=jnp.float32) + b3_ref[...]
        x = _ln_relu(x)

        # fc4 on cat([xs, actions], dim=1): build the concat in a small VMEM
        # scratch (two static lane-slice stores) and do ONE fused matmul.
        cat_ref[:, :FCS3] = x
        cat_ref[:, FCS3:] = actions
        x = jnp.dot(cat_ref[...], w4_ref[...], preferred_element_type=jnp.float32) + b4_ref[...]
        x = _ln_relu(x)

        # fc5 (no LN / ReLU): VPU multiply + XLU lane reduce instead of an MXU
        # push chain producing a 1-wide result.
        q = jnp.sum(x * w5r_ref[...], axis=-1, keepdims=True) + b5_ref[...]
        # Lane-dense store: broadcast the per-row scalar across all 128 lanes.
        out_ref[...] = jnp.broadcast_to(q, out_ref.shape)

    return kernel


def critic_forward(states, actions, params, *, tb=DEFAULT_TB):
    """states: (B, state_size), actions: (B, action_size) -> (B, 1)."""
    B, S = states.shape
    A = actions.shape[1]
    TB, Bp = _choose_tiling(B, tb)

    # Merge the two input streams into one (B, S+A) array; pad the batch so it
    # divides evenly (padded zero rows are harmless: LN gives 0*rsqrt(eps)=0).
    sa = jnp.concatenate([states, actions], axis=1)
    if Bp != B:
        sa = jnp.pad(sa, ((0, Bp - B), (0, 0)))

    w5_row = params["w5"].reshape(1, FC4)
    weight_args = (
        params["w1"], params["b1"],
        params["w2"], params["b2"],
        params["w3"], params["b3"],
        params["w4"], params["b4"],
        w5_row, params["b5"],
    )

    grid = (Bp // TB,)

    # Activation stream: new tile per grid step (auto double-buffered).
    sa_spec = pl.BlockSpec((TB, S + A), lambda i: (i, 0))
    # Weights/biases: constant index_map -> DMA'd once, stay resident in VMEM.
    weight_specs = [pl.BlockSpec(a.shape, lambda i: (0, 0)) for a in weight_args]
    out_spec = pl.BlockSpec((TB, OUT_LANES), lambda i: (i, 0))

    flops = 2 * Bp * (S * FCS1 + FCS1 * FCS2 + FCS2 * FCS3 + (FCS3 + A) * FC4 + FC4)
    weight_bytes = sum(int(np.prod(a.shape)) * a.dtype.itemsize for a in weight_args)
    bytes_accessed = Bp * (S + A) * 4 + Bp * OUT_LANES * 4 + weight_bytes

    out = pl.pallas_call(
        _make_kernel(S),
        out_shape=jax.ShapeDtypeStruct((Bp, OUT_LANES), jnp.float32),
        grid=grid,
        in_specs=[sa_spec] + weight_specs,
        out_specs=out_spec,
        scratch_shapes=[pltpu.VMEM((TB, FCS3 + A), jnp.float32)],
        compiler_params=pltpu.CompilerParams(
            dimension_semantics=("parallel",),
            vmem_limit_bytes=VMEM_LIMIT_BYTES),
        cost_estimate=pl.CostEstimate(
            flops=flops, transcendentals=4 * Bp, bytes_accessed=bytes_accessed),
    )(sa, *weight_args)

    return out[:B, :1]


def init_critic_params(key, state_size, action_size):
    """Mirrors the PyTorch `init_weights`:
    Linear weights ~ U(-sqrt(6/(fan_in+fan_out)), +...), biases = 0.
    LayerNorm affine params are PyTorch defaults (gamma=1, beta=0) -> identity."""
    def linear(k, fan_in, fan_out):
        bound = float(np.sqrt(6.0 / (fan_in + fan_out)))
        w = jax.random.uniform(k, (fan_in, fan_out), jnp.float32, -bound, bound)
        b = jnp.zeros((1, fan_out), jnp.float32)
        return w, b

    k1, k2, k3, k4, k5 = jax.random.split(key, 5)
    w1, b1 = linear(k1, state_size, FCS1)
    w2, b2 = linear(k2, FCS1, FCS2)
    w3, b3 = linear(k3, FCS2, FCS3)
    w4, b4 = linear(k4, FCS3 + action_size, FC4)
    w5, b5 = linear(k5, FC4, 1)
    return dict(w1=w1, b1=b1, w2=w2, b2=b2, w3=w3, b3=b3,
                w4=w4, b4=b4, w5=w5, b5=b5)


def critic_reference(states, actions, params):
    """Pure-JAX reference for sanity checking."""
    x = _ln_relu(states @ params["w1"] + params["b1"])
    x = _ln_relu(x @ params["w2"] + params["b2"])
    x = _ln_relu(x @ params["w3"] + params["b3"])
    x = _ln_relu(jnp.concatenate([x, actions], axis=1) @ params["w4"] + params["b4"])
    return x @ params["w5"] + params["b5"]


if __name__ == "__main__":
    B, STATE_SIZE, ACTION_SIZE = 8, 16, 4

    key = jax.random.PRNGKey(0)
    k_states, k_actions, k_params = jax.random.split(key, 3)

    states = jax.random.normal(k_states, (B, STATE_SIZE), jnp.float32)
    actions = jax.random.uniform(k_actions, (B, ACTION_SIZE), jnp.float32, -1.0, 1.0)
    params = init_critic_params(k_params, STATE_SIZE, ACTION_SIZE)

    q = jax.block_until_ready(critic_forward(states, actions, params))
    q_ref = critic_reference(states, actions, params)
    np.testing.assert_allclose(np.asarray(q), np.asarray(q_ref), rtol=1e-4, atol=1e-4)
    assert q.shape == (B, 1)

    # Also exercise the multi-step grid (two tiles -> both v7x TensorCores)
    # and the batch-padding path (B not a multiple of the tile).
    B2 = 300
    states2 = jax.random.normal(jax.random.PRNGKey(1), (B2, STATE_SIZE), jnp.float32)
    actions2 = jax.random.uniform(jax.random.PRNGKey(2), (B2, ACTION_SIZE),
                                  jnp.float32, -1.0, 1.0)
    q2 = jax.block_until_ready(critic_forward(states2, actions2, params))
    q2_ref = critic_reference(states2, actions2, params)
    np.testing.assert_allclose(np.asarray(q2), np.asarray(q2_ref), rtol=1e-4, atol=1e-4)
    assert q2.shape == (B2, 1)

    print("KERNEL_OK")
</pallas_src>

<mosaic_0001>
module attributes {stable_mosaic.version = 11 : i64} {
  func.func @kernel(%arg0: i32, %arg1: memref<8x20xf32, #tpu.memory_space<vmem>>, %arg2: memref<16x50xf32, #tpu.memory_space<vmem>>, %arg3: memref<1x50xf32, #tpu.memory_space<vmem>>, %arg4: memref<50x100xf32, #tpu.memory_space<vmem>>, %arg5: memref<1x100xf32, #tpu.memory_space<vmem>>, %arg6: memref<100x4xf32, #tpu.memory_space<vmem>>, %arg7: memref<1x4xf32, #tpu.memory_space<vmem>>, %arg8: memref<8x24xf32, #tpu.memory_space<vmem>>, %arg9: memref<1x24xf32, #tpu.memory_space<vmem>>, %arg10: memref<1x24xf32, #tpu.memory_space<vmem>>, %arg11: memref<1x1xf32, #tpu.memory_space<vmem>>, %arg12: memref<8x128xf32, #tpu.memory_space<vmem>>, %arg13: memref<8x8xf32, #tpu.memory_space<vmem>>) attributes {dimension_semantics = [#tpu.dimension_semantics<parallel>], iteration_bounds = array<i64: 1>, scalar_prefetch = 0 : i64, scratch_operands = 1 : i64, tpu.core_type = #tpu.core_type<tc>, window_params = [{transform_indices = @transform_0, window_bounds = array<i64: 8, 20>}, {pipeline_mode = #tpu.pipeline_mode<synchronous>, transform_indices = @transform_1, window_bounds = array<i64: 16, 50>}, {pipeline_mode = #tpu.pipeline_mode<synchronous>, transform_indices = @transform_2, window_bounds = array<i64: 1, 50>}, {pipeline_mode = #tpu.pipeline_mode<synchronous>, transform_indices = @transform_3, window_bounds = array<i64: 50, 100>}, {pipeline_mode = #tpu.pipeline_mode<synchronous>, transform_indices = @transform_4, window_bounds = array<i64: 1, 100>}, {pipeline_mode = #tpu.pipeline_mode<synchronous>, transform_indices = @transform_5, window_bounds = array<i64: 100, 4>}, {pipeline_mode = #tpu.pipeline_mode<synchronous>, transform_indices = @transform_6, window_bounds = array<i64: 1, 4>}, {pipeline_mode = #tpu.pipeline_mode<synchronous>, transform_indices = @transform_7, window_bounds = array<i64: 8, 24>}, {pipeline_mode = #tpu.pipeline_mode<synchronous>, transform_indices = @transform_8, window_bounds = array<i64: 1, 24>}, {pipeline_mode = #tpu.pipeline_mode<synchronous>, transform_indices = @transform_9, window_bounds = array<i64: 1, 24>}, {pipeline_mode = #tpu.pipeline_mode<synchronous>, transform_indices = @transform_10, window_bounds = array<i64: 1, 1>}, {transform_indices = @transform_11, window_bounds = array<i64: 8, 128>}]} {
    %c0 = arith.constant 0 : index
    %c0_0 = arith.constant 0 : index
    %0 = vector.load %arg1[%c0, %c0_0] : memref<8x20xf32, #tpu.memory_space<vmem>>, vector<8x20xf32>
    %1 = vector.extract_strided_slice %0 {offsets = [0, 0], sizes = [8, 16], strides = [1, 1]} : vector<8x20xf32> to vector<8x16xf32>
    %2 = vector.extract_strided_slice %0 {offsets = [0, 16], sizes = [8, 4], strides = [1, 1]} : vector<8x20xf32> to vector<8x4xf32>
    %c0_1 = arith.constant 0 : index
    %c0_2 = arith.constant 0 : index
    %3 = vector.load %arg2[%c0_1, %c0_2] : memref<16x50xf32, #tpu.memory_space<vmem>>, vector<16x50xf32>
    %cst = arith.constant dense<0.000000e+00> : vector<8x50xf32>
    %4 = tpu.matmul %1, %3, %cst {dimension_numbers = #tpu.dot_dimension_numbers<[1], [0], [0], [1], [0, 0, 1, 1], [], []>} : vector<8x16xf32>, vector<16x50xf32>, vector<8x50xf32> -> vector<8x50xf32>
    %c0_3 = arith.constant 0 : index
    %c0_4 = arith.constant 0 : index
    %5 = vector.load %arg3[%c0_3, %c0_4] : memref<1x50xf32, #tpu.memory_space<vmem>>, vector<1x50xf32>
    %6 = vector.broadcast %5 : vector<1x50xf32> to vector<8x50xf32>
    %7 = arith.addf %4, %6 : vector<8x50xf32>
    %cst_5 = arith.constant dense<0.000000e+00> : vector<8xf32>
    %8 = vector.multi_reduction <add>, %7, %cst_5 [1] : vector<8x50xf32> to vector<8xf32>
    %9 = vector.shape_cast %8 : vector<8xf32> to vector<8x1xf32>
    %cst_6 = arith.constant 5.000000e+01 : f32
    %10 = vector.broadcast %cst_6 : f32 to vector<8x1xf32>
    %11 = arith.divf %9, %10 : vector<8x1xf32>
    %12 = vector.broadcast %11 : vector<8x1xf32> to vector<8x50xf32>
    %13 = arith.subf %7, %12 : vector<8x50xf32>
    %14 = arith.mulf %13, %13 : vector<8x50xf32>
    %cst_7 = arith.constant dense<0.000000e+00> : vector<8xf32>
    %15 = vector.multi_reduction <add>, %14, %cst_7 [1] : vector<8x50xf32> to vector<8xf32>
    %16 = vector.shape_cast %15 : vector<8xf32> to vector<8x1xf32>
    %cst_8 = arith.constant 5.000000e+01 : f32
    %17 = vector.broadcast %cst_8 : f32 to vector<8x1xf32>
    %18 = arith.divf %16, %17 : vector<8x1xf32>
    %19 = vector.broadcast %11 : vector<8x1xf32> to vector<8x50xf32>
    %20 = arith.subf %7, %19 : vector<8x50xf32>
    %cst_9 = arith.constant 9.99999974E-6 : f32
    %21 = vector.broadcast %cst_9 : f32 to vector<8x1xf32>
    %22 = arith.addf %18, %21 : vector<8x1xf32>
    %23 = math.rsqrt %22 : vector<8x1xf32>
    %24 = vector.broadcast %23 : vector<8x1xf32> to vector<8x50xf32>
    %25 = arith.mulf %20, %24 : vector<8x50xf32>
    %cst_10 = arith.constant 0.000000e+00 : f32
    %26 = vector.broadcast %cst_10 : f32 to vector<8x50xf32>
    %27 = arith.maximumf %25, %26 : vector<8x50xf32>
    %c0_11 = arith.constant 0 : index
    %c0_12 = arith.constant 0 : index
    %28 = vector.load %arg4[%c0_11, %c0_12] : memref<50x100xf32, #tpu.memory_space<vmem>>, vector<50x100xf32>
    %cst_13 = arith.constant dense<0.000000e+00> : vector<8x100xf32>
    %29 = tpu.matmul %27, %28, %cst_13 {dimension_numbers = #tpu.dot_dimension_numbers<[1], [0], [0], [1], [0, 0, 1, 1], [], []>} : vector<8x50xf32>, vector<50x100xf32>, vector<8x100xf32> -> vector<8x100xf32>
    %c0_14 = arith.constant 0 : index
    %c0_15 = arith.constant 0 : index
    %30 = vector.load %arg5[%c0_14, %c0_15] : memref<1x100xf32, #tpu.memory_space<vmem>>, vector<1x100xf32>
    %31 = vector.broadcast %30 : vector<1x100xf32> to vector<8x100xf32>
    %32 = arith.addf %29, %31 : vector<8x100xf32>
    %cst_16 = arith.constant dense<0.000000e+00> : vector<8xf32>
    %33 = vector.multi_reduction <add>, %32, %cst_16 [1] : vector<8x100xf32> to vector<8xf32>
    %34 = vector.shape_cast %33 : vector<8xf32> to vector<8x1xf32>
    %cst_17 = arith.constant 1.000000e+02 : f32
    %35 = vector.broadcast %cst_17 : f32 to vector<8x1xf32>
    %36 = arith.divf %34, %35 : vector<8x1xf32>
    %37 = vector.broadcast %36 : vector<8x1xf32> to vector<8x100xf32>
    %38 = arith.subf %32, %37 : vector<8x100xf32>
    %39 = arith.mulf %38, %38 : vector<8x100xf32>
    %cst_18 = arith.constant dense<0.000000e+00> : vector<8xf32>
    %40 = vector.multi_reduction <add>, %39, %cst_18 [1] : vector<8x100xf32> to vector<8xf32>
    %41 = vector.shape_cast %40 : vector<8xf32> to vector<8x1xf32>
    %cst_19 = arith.constant 1.000000e+02 : f32
    %42 = vector.broadcast %cst_19 : f32 to vector<8x1xf32>
    %43 = arith.divf %41, %42 : vector<8x1xf32>
    %44 = vector.broadcast %36 : vector<8x1xf32> to vector<8x100xf32>
    %45 = arith.subf %32, %44 : vector<8x100xf32>
    %cst_20 = arith.constant 9.99999974E-6 : f32
    %46 = vector.broadcast %cst_20 : f32 to vector<8x1xf32>
    %47 = arith.addf %43, %46 : vector<8x1xf32>
    %48 = math.rsqrt %47 : vector<8x1xf32>
    %49 = vector.broadcast %48 : vector<8x1xf32> to vector<8x100xf32>
    %50 = arith.mulf %45, %49 : vector<8x100xf32>
    %cst_21 = arith.constant 0.000000e+00 : f32
    %51 = vector.broadcast %cst_21 : f32 to vector<8x100xf32>
    %52 = arith.maximumf %50, %51 : vector<8x100xf32>
    %c0_22 = arith.constant 0 : index
    %c0_23 = arith.constant 0 : index
    %53 = vector.load %arg6[%c0_22, %c0_23] : memref<100x4xf32, #tpu.memory_space<vmem>>, vector<100x4xf32>
    %cst_24 = arith.constant dense<0.000000e+00> : vector<8x4xf32>
    %54 = tpu.matmul %52, %53, %cst_24 {dimension_numbers = #tpu.dot_dimension_numbers<[1], [0], [0], [1], [0, 0, 1, 1], [], []>} : vector<8x100xf32>, vector<100x4xf32>, vector<8x4xf32> -> vector<8x4xf32>
    %c0_25 = arith.constant 0 : index
    %c0_26 = arith.constant 0 : index
    %55 = vector.load %arg7[%c0_25, %c0_26] : memref<1x4xf32, #tpu.memory_space<vmem>>, vector<1x4xf32>
    %56 = vector.broadcast %55 : vector<1x4xf32> to vector<8x4xf32>
    %57 = arith.addf %54, %56 : vector<8x4xf32>
    %cst_27 = arith.constant dense<0.000000e+00> : vector<8xf32>
    %58 = vector.multi_reduction <add>, %57, %cst_27 [1] : vector<8x4xf32> to vector<8xf32>
    %59 = vector.shape_cast %58 : vector<8xf32> to vector<8x1xf32>
    %cst_28 = arith.constant 4.000000e+00 : f32
    %60 = vector.broadcast %cst_28 : f32 to vector<8x1xf32>
    %61 = arith.divf %59, %60 : vector<8x1xf32>
    %62 = vector.broadcast %61 : vector<8x1xf32> to vector<8x4xf32>
    %63 = arith.subf %57, %62 : vector<8x4xf32>
    %64 = arith.mulf %63, %63 : vector<8x4xf32>
    %cst_29 = arith.constant dense<0.000000e+00> : vector<8xf32>
    %65 = vector.multi_reduction <add>, %64, %cst_29 [1] : vector<8x4xf32> to vector<8xf32>
    %66 = vector.shape_cast %65 : vector<8xf32> to vector<8x1xf32>
    %cst_30 = arith.constant 4.000000e+00 : f32
    %67 = vector.broadcast %cst_30 : f32 to vector<8x1xf32>
    %68 = arith.divf %66, %67 : vector<8x1xf32>
    %69 = vector.broadcast %61 : vector<8x1xf32> to vector<8x4xf32>
    %70 = arith.subf %57, %69 : vector<8x4xf32>
    %cst_31 = arith.constant 9.99999974E-6 : f32
    %71 = vector.broadcast %cst_31 : f32 to vector<8x1xf32>
    %72 = arith.addf %68, %71 : vector<8x1xf32>
    %73 = math.rsqrt %72 : vector<8x1xf32>
    %74 = vector.broadcast %73 : vector<8x1xf32> to vector<8x4xf32>
    %75 = arith.mulf %70, %74 : vector<8x4xf32>
    %cst_32 = arith.constant 0.000000e+00 : f32
    %76 = vector.broadcast %cst_32 : f32 to vector<8x4xf32>
    %77 = arith.maximumf %75, %76 : vector<8x4xf32>
    %c0_33 = arith.constant 0 : index
    %c0_34 = arith.constant 0 : index
    %78 = vector.load %arg13[%c0_33, %c0_34] : memref<8x8xf32, #tpu.memory_space<vmem>>, vector<8x4xf32>
    tpu.vector_store %arg13[%c0_33, %c0_34], %77 {strides = array<i32>} : memref<8x8xf32, #tpu.memory_space<vmem>>, vector<8x4xf32>,
    %c0_35 = arith.constant 0 : index
    %c4 = arith.constant 4 : index
    %79 = vector.load %arg13[%c0_35, %c4] : memref<8x8xf32, #tpu.memory_space<vmem>>, vector<8x4xf32>
    tpu.vector_store %arg13[%c0_35, %c4], %2 {strides = array<i32>} : memref<8x8xf32, #tpu.memory_space<vmem>>, vector<8x4xf32>,
    %c0_36 = arith.constant 0 : index
    %c0_37 = arith.constant 0 : index
    %80 = vector.load %arg13[%c0_36, %c0_37] : memref<8x8xf32, #tpu.memory_space<vmem>>, vector<8x8xf32>
    %c0_38 = arith.constant 0 : index
    %c0_39 = arith.constant 0 : index
    %81 = vector.load %arg8[%c0_38, %c0_39] : memref<8x24xf32, #tpu.memory_space<vmem>>, vector<8x24xf32>
    %cst_40 = arith.constant dense<0.000000e+00> : vector<8x24xf32>
    %82 = tpu.matmul %80, %81, %cst_40 {dimension_numbers = #tpu.dot_dimension_numbers<[1], [0], [0], [1], [0, 0, 1, 1], [], []>} : vector<8x8xf32>, vector<8x24xf32>, vector<8x24xf32> -> vector<8x24xf32>
    %c0_41 = arith.constant 0 : index
    %c0_42 = arith.constant 0 : index
    %83 = vector.load %arg9[%c0_41, %c0_42] : memref<1x24xf32, #tpu.memory_space<vmem>>, vector<1x24xf32>
    %84 = vector.broadcast %83 : vector<1x24xf32> to vector<8x24xf32>
    %85 = arith.addf %82, %84 : vector<8x24xf32>
    %cst_43 = arith.constant dense<0.000000e+00> : vector<8xf32>
    %86 = vector.multi_reduction <add>, %85, %cst_43 [1] : vector<8x24xf32> to vector<8xf32>
    %87 = vector.shape_cast %86 : vector<8xf32> to vector<8x1xf32>
    %cst_44 = arith.constant 2.400000e+01 : f32
    %88 = vector.broadcast %cst_44 : f32 to vector<8x1xf32>
    %89 = arith.divf %87, %88 : vector<8x1xf32>
    %90 = vector.broadcast %89 : vector<8x1xf32> to vector<8x24xf32>
    %91 = arith.subf %85, %90 : vector<8x24xf32>
    %92 = arith.mulf %91, %91 : vector<8x24xf32>
    %cst_45 = arith.constant dense<0.000000e+00> : vector<8xf32>
    %93 = vector.multi_reduction <add>, %92, %cst_45 [1] : vector<8x24xf32> to vector<8xf32>
    %94 = vector.shape_cast %93 : vector<8xf32> to vector<8x1xf32>
    %cst_46 = arith.constant 2.400000e+01 : f32
    %95 = vector.broadcast %cst_46 : f32 to vector<8x1xf32>
    %96 = arith.divf %94, %95 : vector<8x1xf32>
    %97 = vector.broadcast %89 : vector<8x1xf32> to vector<8x24xf32>
    %98 = arith.subf %85, %97 : vector<8x24xf32>
    %cst_47 = arith.constant 9.99999974E-6 : f32
    %99 = vector.broadcast %cst_47 : f32 to vector<8x1xf32>
    %100 = arith.addf %96, %99 : vector<8x1xf32>
    %101 = math.rsqrt %100 : vector<8x1xf32>
    %102 = vector.broadcast %101 : vector<8x1xf32> to vector<8x24xf32>
    %103 = arith.mulf %98, %102 : vector<8x24xf32>
    %cst_48 = arith.constant 0.000000e+00 : f32
    %104 = vector.broadcast %cst_48 : f32 to vector<8x24xf32>
    %105 = arith.maximumf %103, %104 : vector<8x24xf32>
    %c0_49 = arith.constant 0 : index
    %c0_50 = arith.constant 0 : index
    %106 = vector.load %arg10[%c0_49, %c0_50] : memref<1x24xf32, #tpu.memory_space<vmem>>, vector<1x24xf32>
    %107 = vector.broadcast %106 : vector<1x24xf32> to vector<8x24xf32>
    %108 = arith.mulf %105, %107 : vector<8x24xf32>
    %cst_51 = arith.constant dense<0.000000e+00> : vector<8xf32>
    %109 = vector.multi_reduction <add>, %108, %cst_51 [1] : vector<8x24xf32> to vector<8xf32>
    %110 = vector.shape_cast %109 : vector<8xf32> to vector<8x1xf32>
    %c0_52 = arith.constant 0 : index
    %c0_53 = arith.constant 0 : index
    %111 = vector.load %arg11[%c0_52, %c0_53] : memref<1x1xf32, #tpu.memory_space<vmem>>, vector<1x1xf32>
    %112 = vector.broadcast %111 : vector<1x1xf32> to vector<8x1xf32>
    %113 = arith.addf %110, %112 : vector<8x1xf32>
    %114 = vector.shape_cast %113 : vector<8x1xf32> to vector<8x1xf32>
    %115 = vector.broadcast %114 : vector<8x1xf32> to vector<8x128xf32>
    %c0_54 = arith.constant 0 : index
    %c0_55 = arith.constant 0 : index
    %116 = vector.load %arg12[%c0_54, %c0_55] : memref<8x128xf32, #tpu.memory_space<vmem>>, vector<8x128xf32>
    tpu.vector_store %arg12[%c0_54, %c0_55], %115 {strides = array<i32>} : memref<8x128xf32, #tpu.memory_space<vmem>>, vector<8x128xf32>,
    return
  }
  func.func @transform_0(%arg0: i32) -> (i32, i32) {
    %c0_i32 = arith.constant 0 : i32
    %c0_i32_0 = arith.constant 0 : i32
    return %arg0, %c0_i32 : i32, i32
  }
  func.func @transform_1(%arg0: i32) -> (i32, i32) {
    %c0_i32 = arith.constant 0 : i32
    %c0_i32_0 = arith.constant 0 : i32
    %c0_i32_1 = arith.constant 0 : i32
    return %c0_i32, %c0_i32_0 : i32, i32
  }
  func.func @transform_2(%arg0: i32) -> (i32, i32) {
    %c0_i32 = arith.constant 0 : i32
    %c0_i32_0 = arith.constant 0 : i32
    %c0_i32_1 = arith.constant 0 : i32
    return %c0_i32, %c0_i32_0 : i32, i32
  }
  func.func @transform_3(%arg0: i32) -> (i32, i32) {
    %c0_i32 = arith.constant 0 : i32
    %c0_i32_0 = arith.constant 0 : i32
    %c0_i32_1 = arith.constant 0 : i32
    return %c0_i32, %c0_i32_0 : i32, i32
  }
  func.func @transform_4(%arg0: i32) -> (i32, i32) {
    %c0_i32 = arith.constant 0 : i32
    %c0_i32_0 = arith.constant 0 : i32
    %c0_i32_1 = arith.constant 0 : i32
    return %c0_i32, %c0_i32_0 : i32, i32
  }
  func.func @transform_5(%arg0: i32) -> (i32, i32) {
    %c0_i32 = arith.constant 0 : i32
    %c0_i32_0 = arith.constant 0 : i32
    %c0_i32_1 = arith.constant 0 : i32
    return %c0_i32, %c0_i32_0 : i32, i32
  }
  func.func @transform_6(%arg0: i32) -> (i32, i32) {
    %c0_i32 = arith.constant 0 : i32
    %c0_i32_0 = arith.constant 0 : i32
    %c0_i32_1 = arith.constant 0 : i32
    return %c0_i32, %c0_i32_0 : i32, i32
  }
  func.func @transform_7(%arg0: i32) -> (i32, i32) {
    %c0_i32 = arith.constant 0 : i32
    %c0_i32_0 = arith.constant 0 : i32
    %c0_i32_1 = arith.constant 0 : i32
    return %c0_i32, %c0_i32_0 : i32, i32
  }
  func.func @transform_8(%arg0: i32) -> (i32, i32) {
    %c0_i32 = arith.constant 0 : i32
    %c0_i32_0 = arith.constant 0 : i32
    %c0_i32_1 = arith.constant 0 : i32
    return %c0_i32, %c0_i32_0 : i32, i32
  }
  func.func @transform_9(%arg0: i32) -> (i32, i32) {
    %c0_i32 = arith.constant 0 : i32
    %c0_i32_0 = arith.constant 0 : i32
    %c0_i32_1 = arith.constant 0 : i32
    return %c0_i32, %c0_i32_0 : i32, i32
  }
  func.func @transform_10(%arg0: i32) -> (i32, i32) {
    %c0_i32 = arith.constant 0 : i32
    %c0_i32_0 = arith.constant 0 : i32
    %c0_i32_1 = arith.constant 0 : i32
    return %c0_i32, %c0_i32_0 : i32, i32
  }
  func.func @transform_11(%arg0: i32) -> (i32, i32) {
    %c0_i32 = arith.constant 0 : i32
    %c0_i32_0 = arith.constant 0 : i32
    return %arg0, %c0_i32 : i32, i32
  }
}

</mosaic_0001>

<llo_original>
// kernel: tpu_custom_call.1
$region0: #{tpu_custom_call.1}
  #allocation0 [shape = 'u32[]', space=smem, size = 0x4, offset = 0x4, fixed_abs, tag = 'smem constant byte address 0x4 - core index']
  #allocation1 [shape = 'u32[144,128]{1,0:T(1,128)}', space=vmem, size = 0x12000, scoped, tag = 'internal scratch']
  #allocation2 [shape = 'f32[8,8]{1,0:T(8,128)}', space=vmem, size = 0x1000, scoped, tag = 'scratch operand']
  #allocation3 [shape = 'f32[1,1]{1,0:T(1,128)S(1)}', space=vmem, size = 0x200, scoped, tag = 'scoped memory for tpu_custom_call.1']
  %s0 = inlined_call_operand.vmem [shape: f32[8,20], index: 0, kind: input, shape index: {}]
  %s1 = inlined_call_operand.vmem [shape: f32[16,50], index: 1, kind: input, shape index: {}]
  %s2 = inlined_call_operand.vmem [shape: f32[1,50], index: 2, kind: input, shape index: {}]
  %s3 = inlined_call_operand.vmem [shape: f32[50,100], index: 3, kind: input, shape index: {}]
  %s4 = inlined_call_operand.vmem [shape: f32[1,100], index: 4, kind: input, shape index: {}]
  %s5 = inlined_call_operand.vmem [shape: f32[100,4], index: 5, kind: input, shape index: {}]
  %s6 = inlined_call_operand.vmem [shape: f32[1,4], index: 6, kind: input, shape index: {}]
  %s7 = inlined_call_operand.vmem [shape: f32[8,24], index: 7, kind: input, shape index: {}]
  %s8 = inlined_call_operand.vmem [shape: f32[1,24], index: 8, kind: input, shape index: {}]
  %s9 = inlined_call_operand.vmem [shape: f32[1,24], index: 9, kind: input, shape index: {}]
  %s10 = inlined_call_operand.<no memory space> [shape: f32[1,1], index: 10, kind: input, shape index: {}]
  %s11 = inlined_call_operand.hbm [shape: f32[8,128], index: 11, kind: output, shape index: {}]
  %s12 = sld [smem:[#allocation0]]
  $region54: #{tpu_custom_call.1} parent=0
    _
  %s14 = ssub.s32 1, %s12
  %s15 = scalar_select 0, %s14, %s12
  %v16 = vstv %s10
  %17 = vst [vmem:[#allocation3] sm:$0x1] %v16
  $region1: #{tpu_custom_call.1} parent=0
    #allocation4 [shape = 'u8[4096]{0}', space=vmem, size = 0x1000, scoped, tag = 'output window, operand 0, single buffered']
    #allocation5 [shape = 's32[1]{0}', space=sflag, size = 0x4, scoped, tag = 'scoped memory for tpu_custom_call.1']
    %18 = vsyncpa [#allocation5], 0
    // Predicated region
    $region2: #{tpu_custom_call.1} parent=1 // pred_check
      _
    $region3: #{tpu_custom_call.1} parent=1 // pred_check_branch
      %20 = sbr.rel (0) target = $region5
    $region4: #{tpu_custom_call.1} parent=1 // pred_region
      _
    $region5: #{tpu_custom_call.1} parent=1 // pred_fallthru
      _
    // Predicated region
    $region6: #{tpu_custom_call.1} parent=1 // pred_check
      _
    $region7: #{tpu_custom_call.1} parent=1 // pred_check_branch
      %22 = sbr.rel (0) target = $region9
    $region8: #{tpu_custom_call.1} parent=1 // pred_region
      _
    $region9: #{tpu_custom_call.1} parent=1 // pred_fallthru
      _
    // Predicated region
    $region10: #{tpu_custom_call.1} parent=1 // pred_check
      _
    $region11: #{tpu_custom_call.1} parent=1 // pred_check_branch
      %24 = sbr.rel (0) target = $region13
    $region12: #{tpu_custom_call.1} parent=1 // pred_region
      _
    $region13: #{tpu_custom_call.1} parent=1 // pred_fallthru
      _
    // Predicated region
    $region14: #{tpu_custom_call.1} parent=1 // pred_check
      _
    $region15: #{tpu_custom_call.1} parent=1 // pred_check_branch
      %26 = sbr.rel (0) target = $region17
    $region16: #{tpu_custom_call.1} parent=1 // pred_region
      _
    $region17: #{tpu_custom_call.1} parent=1 // pred_fallthru
      _
    // Predicated region
    $region18: #{tpu_custom_call.1} parent=1 // pred_check
      _
    $region19: #{tpu_custom_call.1} parent=1 // pred_check_branch
      %28 = sbr.rel (0) target = $region21
    $region20: #{tpu_custom_call.1} parent=1 // pred_region
      _
    $region21: #{tpu_custom_call.1} parent=1 // pred_fallthru
      _
    // Predicated region
    $region22: #{tpu_custom_call.1} parent=1 // pred_check
      _
    $region23: #{tpu_custom_call.1} parent=1 // pred_check_branch
      %30 = sbr.rel (0) target = $region25
    $region24: #{tpu_custom_call.1} parent=1 // pred_region
      _
    $region25: #{tpu_custom_call.1} parent=1 // pred_fallthru
      _
    // Predicated region
    $region26: #{tpu_custom_call.1} parent=1 // pred_check
      _
    $region27: #{tpu_custom_call.1} parent=1 // pred_check_branch
      %32 = sbr.rel (0) target = $region29
    $region28: #{tpu_custom_call.1} parent=1 // pred_region
      _
    $region29: #{tpu_custom_call.1} parent=1 // pred_fallthru
      _
    // Predicated region
    $region30: #{tpu_custom_call.1} parent=1 // pred_check
      _
    $region31: #{tpu_custom_call.1} parent=1 // pred_check_branch
      %34 = sbr.rel (0) target = $region33
    $region32: #{tpu_custom_call.1} parent=1 // pred_region
      _
    $region33: #{tpu_custom_call.1} parent=1 // pred_fallthru
      _
    // Predicated region
    $region34: #{tpu_custom_call.1} parent=1 // pred_check
      _
    $region35: #{tpu_custom_call.1} parent=1 // pred_check_branch
      %36 = sbr.rel (0) target = $region37
    $region36: #{tpu_custom_call.1} parent=1 // pred_region
      _
    $region37: #{tpu_custom_call.1} parent=1 // pred_fallthru
      _
    // Predicated region
    $region38: #{tpu_custom_call.1} parent=1 // pred_check
      _
    $region39: #{tpu_custom_call.1} parent=1 // pred_check_branch
      %38 = sbr.rel (0) target = $region41
    $region40: #{tpu_custom_call.1} parent=1 // pred_region
      _
    $region41: #{tpu_custom_call.1} parent=1 // pred_fallthru
      _
    // Predicated region
    $region42: #{tpu_custom_call.1} parent=1 // pred_check
      _
    $region43: #{tpu_custom_call.1} parent=1 // pred_check_branch
      %40 = sbr.rel (0) target = $region45
    $region44: #{tpu_custom_call.1} parent=1 // pred_region
      _
    $region45: #{tpu_custom_call.1} parent=1 // pred_fallthru
      _
    %v41 = vld [vmem:[%s0] sm:$0xff]
    %v42 = vld [vmem:[%s1] sm:$0xff]
    %v43 = vld [vmem:[%s1 + $0x8] sm:$0xff]
    %v44 = vld [vmem:[%s2] sm:$0x1]
    %v46 = vlaneseq
    %v47 = vshrl.u32 %v46, 7
    %v48 = vsub.s32 0, %v47
    %v49 = vrot.slane %v44, %v48
    %vm51 = vcmask 130048
    %v53 = vsel %vm51, %v41, 0
    %55 = vmatprep.subr.mxu0 0.0
    %56 = vmatpush1.msra.mxu0 0.0
    %57 = vmatprep.subr.mxu0 0.0
    %58 = vmatpush1.msra.mxu0 0.0
    %59 = vmatprep.subr.mxu0 0.0
    %60 = vmatpush1.msra.mxu0 0.0
    %61 = vmatprep.subr.mxu0 0.0
    %62 = vmatpush1.msra.mxu0 0.0
    %63 = vmatprep.subr.mxu0 0.0
    %64 = vmatpush1.msra.mxu0 0.0
    %65 = vmatprep.subr.mxu0 0.0
    %66 = vmatpush1.msra.mxu0 0.0
    %67 = vmatprep.subr.mxu0 0.0
    %68 = vmatpush1.msra.mxu0 0.0
    %69 = vmatprep.subr.mxu0 0.0
    %70 = vmatpush1.msra.mxu0 0.0
    %71 = vmatprep.subr.mxu0 0.0
    %72 = vmatpush1.msra.mxu0 0.0
    %73 = vmatprep.subr.mxu0 0.0
    %74 = vmatpush1.msra.mxu0 0.0
    %75 = vmatprep.subr.mxu0 0.0
    %76 = vmatpush1.msra.mxu0 0.0
    %77 = vmatprep.subr.mxu0 0.0
    %78 = vmatpush1.msra.mxu0 0.0
    %79 = vmatprep.subr.mxu0 0.0
    %80 = vmatpush1.msra.mxu0 0.0
    %81 = vmatprep.subr.mxu0 0.0
    %82 = vmatpush1.msra.mxu0 0.0
    %83 = vmatprep.subr.mxu0 0.0
    %84 = vmatpush1.msra.mxu0 %v43
    %85 = vmatprep.subr.mxu0 0.0
    %86 = vmatpush1.msra.mxu0 %v42
    %87 = vmatprep.subr.mxu0 0.0
    %88 = vmatpush2.msra.mxu0 0.0
    %89 = vmatprep.subr.mxu0 0.0
    %90 = vmatpush2.msra.mxu0 0.0
    %91 = vmatprep.subr.mxu0 0.0
    %92 = vmatpush2.msra.mxu0 0.0
    %93 = vmatprep.subr.mxu0 0.0
    %94 = vmatpush2.msra.mxu0 0.0
    %95 = vmatprep.subr.mxu0 0.0
    %96 = vmatpush2.msra.mxu0 0.0
    %97 = vmatprep.subr.mxu0 0.0
    %98 = vmatpush2.msra.mxu0 0.0
    %99 = vmatprep.subr.mxu0 0.0
    %100 = vmatpush2.msra.mxu0 0.0
    %101 = vmatprep.subr.mxu0 0.0
    %102 = vmatpush2.msra.mxu0 0.0
    %103 = vmatprep.subr.mxu0 0.0
    %104 = vmatpush2.msra.mxu0 0.0
    %105 = vmatprep.subr.mxu0 0.0
    %106 = vmatpush2.msra.mxu0 0.0
    %107 = vmatprep.subr.mxu0 0.0
    %108 = vmatpush2.msra.mxu0 0.0
    %109 = vmatprep.subr.mxu0 0.0
    %110 = vmatpush2.msra.mxu0 0.0
    %111 = vmatprep.subr.mxu0 0.0
    %112 = vmatpush2.msra.mxu0 0.0
    %113 = vmatprep.subr.mxu0 0.0
    %114 = vmatpush2.msra.mxu0 0.0
    %115 = vmatprep.subr.mxu0 0.0
    %116 = vmatpush2.msra.mxu0 0.0
    %117 = vmatprep.subr.mxu0 0.0
    %118 = vmatpush2.msra.mxu0 0.0
    %119 = vmatprep.mubr.f32.mxu0 0.0
    %120 = vmatmul.mubr.f32.gmra.mxu0 %v53
    %v121 = vpop.f32.mrf.mxu0
    %v122 = vadd.f32 %v49, %v121
    %v123 = vpop.f32.mrf.mxu0
    %124 = vdwg.mxu0
    %vm125 = vcmask 408576
    %v126 = vsel %vm125, %v122, 0.0
    %127 = vadd.xlane.f32.xlu0 %v126
    %v128 = vpop.xlane.xlu0 %127
    %v129 = vrcp.pop 50.0
    %v130 = vmul.f32 %v128, %v129
    %v131 = vsub.f32 %v122, %v130
    %v132 = vmul.f32 %v131, %v131
    %v133 = vsel %vm125, %v132, 0.0
    %134 = vadd.xlane.f32.xlu0 %v133
    %v135 = vpop.xlane.xlu0 %134
    %v136 = vmul.f32 %v135, %v129
    %v137 = vadd.f32 %v136, 1e-05
    %v138 = vrsqrt.pop %v137
    %v139 = vmul.f32 %v131, %v138
    %v140 = vmax.f32 %v139, 0.0
    %v141 = vld [vmem:[%s3] sm:$0xff]
    %v142 = vld [vmem:[%s3 + $0x8] sm:$0xff]
    %v143 = vld [vmem:[%s3 + $0x10] sm:$0xff]
    %v144 = vld [vmem:[%s3 + $0x18] sm:$0xff]
    %v145 = vld [vmem:[%s3 + $0x20] sm:$0xff]
    %v146 = vld [vmem:[%s3 + $0x28] sm:$0xff]
    %v147 = vld [vmem:[%s3 + $0x30] sm:$0x3]
    %v148 = vld [vmem:[%s4] sm:$0x1]
    %v150 = vlaneseq
    %v151 = vshrl.u32 %v150, 7
    %v152 = vsub.s32 0, %v151
    %v153 = vrot.slane %v148, %v152
    %v156 = vsel %vm125, %v140, 0
    %vm158 = vcmask 1041408
    %v160 = vsel %vm158, %v147, 0
    %162 = vmatprep.subr.mxu0 0.0
    %163 = vmatpush1.msra.mxu0 0.0
    %164 = vmatprep.subr.mxu0 0.0
    %165 = vmatpush1.msra.mxu0 0.0
    %166 = vmatprep.subr.mxu0 0.0
    %167 = vmatpush1.msra.mxu0 0.0
    %168 = vmatprep.subr.mxu0 0.0
    %169 = vmatpush1.msra.mxu0 0.0
    %170 = vmatprep.subr.mxu0 0.0
    %171 = vmatpush1.msra.mxu0 0.0
    %172 = vmatprep.subr.mxu0 0.0
    %173 = vmatpush1.msra.mxu0 0.0
    %174 = vmatprep.subr.mxu0 0.0
    %175 = vmatpush1.msra.mxu0 0.0
    %176 = vmatprep.subr.mxu0 0.0
    %177 = vmatpush1.msra.mxu0 0.0
    %178 = vmatprep.subr.mxu0 0.0
    %179 = vmatpush1.msra.mxu0 0.0
    %180 = vmatprep.subr.mxu0 0.0
    %181 = vmatpush1.msra.mxu0 %v160
    %182 = vmatprep.subr.mxu0 0.0
    %183 = vmatpush1.msra.mxu0 %v146
    %184 = vmatprep.subr.mxu0 0.0
    %185 = vmatpush1.msra.mxu0 %v145
    %186 = vmatprep.subr.mxu0 0.0
    %187 = vmatpush1.msra.mxu0 %v144
    %188 = vmatprep.subr.mxu0 0.0
    %189 = vmatpush1.msra.mxu0 %v143
    %190 = vmatprep.subr.mxu0 0.0
    %191 = vmatpush1.msra.mxu0 %v142
    %192 = vmatprep.subr.mxu0 0.0
    %193 = vmatpush1.msra.mxu0 %v141
    %194 = vmatprep.subr.mxu0 0.0
    %195 = vmatpush2.msra.mxu0 0.0
    %196 = vmatprep.subr.mxu0 0.0
    %197 = vmatpush2.msra.mxu0 0.0
    %198 = vmatprep.subr.mxu0 0.0
    %199 = vmatpush2.msra.mxu0 0.0
    %200 = vmatprep.subr.mxu0 0.0
    %201 = vmatpush2.msra.mxu0 0.0
    %202 = vmatprep.subr.mxu0 0.0
    %203 = vmatpush2.msra.mxu0 0.0
    %204 = vmatprep.subr.mxu0 0.0
    %205 = vmatpush2.msra.mxu0 0.0
    %206 = vmatprep.subr.mxu0 0.0
    %207 = vmatpush2.msra.mxu0 0.0
    %208 = vmatprep.subr.mxu0 0.0
    %209 = vmatpush2.msra.mxu0 0.0
    %210 = vmatprep.subr.mxu0 0.0
    %211 = vmatpush2.msra.mxu0 0.0
    %212 = vmatprep.subr.mxu0 0.0
    %213 = vmatpush2.msra.mxu0 0.0
    %214 = vmatprep.subr.mxu0 0.0
    %215 = vmatpush2.msra.mxu0 0.0
    %216 = vmatprep.subr.mxu0 0.0
    %217 = vmatpush2.msra.mxu0 0.0
    %218 = vmatprep.subr.mxu0 0.0
    %219 = vmatpush2.msra.mxu0 0.0
    %220 = vmatprep.subr.mxu0 0.0
    %221 = vmatpush2.msra.mxu0 0.0
    %222 = vmatprep.subr.mxu0 0.0
    %223 = vmatpush2.msra.mxu0 0.0
    %224 = vmatprep.subr.mxu0 0.0
    %225 = vmatpush2.msra.mxu0 0.0
    %226 = vmatprep.mubr.f32.mxu0 0.0
    %227 = vmatmul.mubr.f32.gmra.mxu0 %v156
    %v228 = vpop.f32.mrf.mxu0
    %v229 = vadd.f32 %v153, %v228
    %v230 = vpop.f32.mrf.mxu0
    %231 = vdwg.mxu0
    %vm232 = vcmask 818176
    %v233 = vsel %vm232, %v229, 0.0
    %234 = vadd.xlane.f32.xlu0 %v233
    %v235 = vpop.xlane.xlu0 %234
    %v236 = vrcp.pop 100.0
    %v237 = vmul.f32 %v235, %v236
    %v238 = vsub.f32 %v229, %v237
    %v239 = vmul.f32 %v238, %v238
    %v240 = vsel %vm232, %v239, 0.0
    %241 = vadd.xlane.f32.xlu0 %v240
    %v242 = vpop.xlane.xlu0 %241
    %v243 = vmul.f32 %v242, %v236
    %v244 = vadd.f32 %v243, 1e-05
    %v245 = vrsqrt.pop %v244
    %v246 = vmul.f32 %v238, %v245
    %v247 = vmax.f32 %v246, 0.0
    %v248 = vld [vmem:[%s5] sm:$0xff]
    %v249 = vld [vmem:[%s5 + $0x8] sm:$0xff]
    %v250 = vld [vmem:[%s5 + $0x10] sm:$0xff]
    %v251 = vld [vmem:[%s5 + $0x18] sm:$0xff]
    %v252 = vld [vmem:[%s5 + $0x20] sm:$0xff]
    %v253 = vld [vmem:[%s5 + $0x28] sm:$0xff]
    %v254 = vld [vmem:[%s5 + $0x30] sm:$0xff]
    %v255 = vld [vmem:[%s5 + $0x38] sm:$0xff]
    %v256 = vld [vmem:[%s5 + $0x40] sm:$0xff]
    %v257 = vld [vmem:[%s5 + $0x48] sm:$0xff]
    %v258 = vld [vmem:[%s5 + $0x50] sm:$0xff]
    %v259 = vld [vmem:[%s5 + $0x58] sm:$0xff]
    %v260 = vld [vmem:[%s5 + $0x60] sm:$0xf]
    %v261 = vld [vmem:[%s6] sm:$0x1]
    %v263 = vlaneseq
    %v264 = vshrl.u32 %v263, 7
    %v265 = vsub.s32 0, %v264
    %v266 = vrot.slane %v261, %v265
    %v269 = vsel %vm232, %v247, 0
    %vm271 = vcmask 1043456
    %v273 = vsel %vm271, %v260, 0
    %275 = vmatprep.subr.mxu0 0.0
    %276 = vmatpush1.msra.mxu0 0.0
    %277 = vmatprep.subr.mxu0 0.0
    %278 = vmatpush1.msra.mxu0 0.0
    %279 = vmatprep.subr.mxu0 0.0
    %280 = vmatpush1.msra.mxu0 0.0
    %281 = vmatprep.subr.mxu0 0.0
    %282 = vmatpush1.msra.mxu0 %v273
    %283 = vmatprep.subr.mxu0 0.0
    %284 = vmatpush1.msra.mxu0 %v259
    %285 = vmatprep.subr.mxu0 0.0
    %286 = vmatpush1.msra.mxu0 %v258
    %287 = vmatprep.subr.mxu0 0.0
    %288 = vmatpush1.msra.mxu0 %v257
    %289 = vmatprep.subr.mxu0 0.0
    %290 = vmatpush1.msra.mxu0 %v256
    %291 = vmatprep.subr.mxu0 0.0
    %292 = vmatpush1.msra.mxu0 %v255
    %293 = vmatprep.subr.mxu0 0.0
    %294 = vmatpush1.msra.mxu0 %v254
    %295 = vmatprep.subr.mxu0 0.0
    %296 = vmatpush1.msra.mxu0 %v253
    %297 = vmatprep.subr.mxu0 0.0
    %298 = vmatpush1.msra.mxu0 %v252
    %299 = vmatprep.subr.mxu0 0.0
    %300 = vmatpush1.msra.mxu0 %v251
    %301 = vmatprep.subr.mxu0 0.0
    %302 = vmatpush1.msra.mxu0 %v250
    %303 = vmatprep.subr.mxu0 0.0
    %304 = vmatpush1.msra.mxu0 %v249
    %305 = vmatprep.subr.mxu0 0.0
    %306 = vmatpush1.msra.mxu0 %v248
    %307 = vmatprep.subr.mxu0 0.0
    %308 = vmatpush2.msra.mxu0 0.0
    %309 = vmatprep.subr.mxu0 0.0
    %310 = vmatpush2.msra.mxu0 0.0
    %311 = vmatprep.subr.mxu0 0.0
    %312 = vmatpush2.msra.mxu0 0.0
    %313 = vmatprep.subr.mxu0 0.0
    %314 = vmatpush2.msra.mxu0 0.0
    %315 = vmatprep.subr.mxu0 0.0
    %316 = vmatpush2.msra.mxu0 0.0
    %317 = vmatprep.subr.mxu0 0.0
    %318 = vmatpush2.msra.mxu0 0.0
    %319 = vmatprep.subr.mxu0 0.0
    %320 = vmatpush2.msra.mxu0 0.0
    %321 = vmatprep.subr.mxu0 0.0
    %322 = vmatpush2.msra.mxu0 0.0
    %323 = vmatprep.subr.mxu0 0.0
    %324 = vmatpush2.msra.mxu0 0.0
    %325 = vmatprep.subr.mxu0 0.0
    %326 = vmatpush2.msra.mxu0 0.0
    %327 = vmatprep.subr.mxu0 0.0
    %328 = vmatpush2.msra.mxu0 0.0
    %329 = vmatprep.subr.mxu0 0.0
    %330 = vmatpush2.msra.mxu0 0.0
    %331 = vmatprep.subr.mxu0 0.0
    %332 = vmatpush2.msra.mxu0 0.0
    %333 = vmatprep.subr.mxu0 0.0
    %334 = vmatpush2.msra.mxu0 0.0
    %335 = vmatprep.subr.mxu0 0.0
    %336 = vmatpush2.msra.mxu0 0.0
    %337 = vmatprep.subr.mxu0 0.0
    %338 = vmatpush2.msra.mxu0 0.0
    %339 = vmatprep.mubr.f32.mxu0 0.0
    %340 = vmatmul.mubr.f32.gmra.mxu0 %v269
    %v341 = vpop.f32.mrf.mxu0
    %v342 = vadd.f32 %v266, %v341
    %v343 = vpop.f32.mrf.mxu0
    %344 = vdwg.mxu0
    %vm345 = vcmask 31744
    %v346 = vsel %vm345, %v342, 0.0
    %347 = vadd.xlane.f32.xlu0 %v346
    %v348 = vpop.xlane.xlu0 %347
    %v349 = vrcp.pop 4.0
    %v350 = vmul.f32 %v348, %v349
    %v351 = vsub.f32 %v342, %v350
    %v352 = vmul.f32 %v351, %v351
    %v353 = vsel %vm345, %v352, 0.0
    %354 = vadd.xlane.f32.xlu0 %v353
    %v355 = vpop.xlane.xlu0 %354
    %v356 = vmul.f32 %v355, %v349
    %v357 = vadd.f32 %v356, 1e-05
    %v358 = vrsqrt.pop %v357
    %v359 = vmul.f32 %v351, %v358
    %v360 = vmax.f32 %v359, 0.0
    %361 = vst.msk [vmem:[#allocation2] sm:$0xff] %vm345, %v360
    %362 = vrot.lane.b32.xlu0 %v41, 116
    %v363 = vpop.permute.xlu0 %362
    %vm365 = vcmask 64544
    %366 = vst.msk [vmem:[#allocation2] sm:$0xff] %vm365, %v363
    %v367 = vld [vmem:[#allocation2] sm:$0xff]
    %v368 = vld [vmem:[%s7] sm:$0xff]
    %v369 = vld [vmem:[%s8] sm:$0x1]
    %v371 = vlaneseq
    %v372 = vshrl.u32 %v371, 7
    %v373 = vsub.s32 0, %v372
    %v374 = vrot.slane %v369, %v373
    %vm376 = vcmask 64512
    %v378 = vsel %vm376, %v367, 0
    %380 = vmatprep.subr.mxu0 0.0
    %381 = vmatpush1.msra.mxu0 0.0
    %382 = vmatprep.subr.mxu0 0.0
    %383 = vmatpush1.msra.mxu0 0.0
    %384 = vmatprep.subr.mxu0 0.0
    %385 = vmatpush1.msra.mxu0 0.0
    %386 = vmatprep.subr.mxu0 0.0
    %387 = vmatpush1.msra.mxu0 0.0
    %388 = vmatprep.subr.mxu0 0.0
    %389 = vmatpush1.msra.mxu0 0.0
    %390 = vmatprep.subr.mxu0 0.0
    %391 = vmatpush1.msra.mxu0 0.0
    %392 = vmatprep.subr.mxu0 0.0
    %393 = vmatpush1.msra.mxu0 0.0
    %394 = vmatprep.subr.mxu0 0.0
    %395 = vmatpush1.msra.mxu0 0.0
    %396 = vmatprep.subr.mxu0 0.0
    %397 = vmatpush1.msra.mxu0 0.0
    %398 = vmatprep.subr.mxu0 0.0
    %399 = vmatpush1.msra.mxu0 0.0
    %400 = vmatprep.subr.mxu0 0.0
    %401 = vmatpush1.msra.mxu0 0.0
    %402 = vmatprep.subr.mxu0 0.0
    %403 = vmatpush1.msra.mxu0 0.0
    %404 = vmatprep.subr.mxu0 0.0
    %405 = vmatpush1.msra.mxu0 0.0
    %406 = vmatprep.subr.mxu0 0.0
    %407 = vmatpush1.msra.mxu0 0.0
    %408 = vmatprep.subr.mxu0 0.0
    %409 = vmatpush1.msra.mxu0 0.0
    %410 = vmatprep.subr.mxu0 0.0
    %411 = vmatpush1.msra.mxu0 %v368
    %412 = vmatprep.subr.mxu0 0.0
    %413 = vmatpush2.msra.mxu0 0.0
    %414 = vmatprep.subr.mxu0 0.0
    %415 = vmatpush2.msra.mxu0 0.0
    %416 = vmatprep.subr.mxu0 0.0
    %417 = vmatpush2.msra.mxu0 0.0
    %418 = vmatprep.subr.mxu0 0.0
    %419 = vmatpush2.msra.mxu0 0.0
    %420 = vmatprep.subr.mxu0 0.0
    %421 = vmatpush2.msra.mxu0 0.0
    %422 = vmatprep.subr.mxu0 0.0
    %423 = vmatpush2.msra.mxu0 0.0
    %424 = vmatprep.subr.mxu0 0.0
    %425 = vmatpush2.msra.mxu0 0.0
    %426 = vmatprep.subr.mxu0 0.0
    %427 = vmatpush2.msra.mxu0 0.0
    %428 = vmatprep.subr.mxu0 0.0
    %429 = vmatpush2.msra.mxu0 0.0
    %430 = vmatprep.subr.mxu0 0.0
    %431 = vmatpush2.msra.mxu0 0.0
    %432 = vmatprep.subr.mxu0 0.0
    %433 = vmatpush2.msra.mxu0 0.0
    %434 = vmatprep.subr.mxu0 0.0
    %435 = vmatpush2.msra.mxu0 0.0
    %436 = vmatprep.subr.mxu0 0.0
    %437 = vmatpush2.msra.mxu0 0.0
    %438 = vmatprep.subr.mxu0 0.0
    %439 = vmatpush2.msra.mxu0 0.0
    %440 = vmatprep.subr.mxu0 0.0
    %441 = vmatpush2.msra.mxu0 0.0
    %442 = vmatprep.subr.mxu0 0.0
    %443 = vmatpush2.msra.mxu0 0.0
    %444 = vmatprep.mubr.f32.mxu0 0.0
    %445 = vmatmul.mubr.f32.gmra.mxu0 %v378
    %v446 = vpop.f32.mrf.mxu0
    %v447 = vadd.f32 %v374, %v446
    %v448 = vpop.f32.mrf.mxu0
    %449 = vdwg.mxu0
    %vm450 = vcmask 195584
    %v451 = vsel %vm450, %v447, 0.0
    %452 = vadd.xlane.f32.xlu0 %v451
    %v453 = vpop.xlane.xlu0 %452
    %v454 = vrcp.pop 24.0
    %v455 = vmul.f32 %v453, %v454
    %v456 = vsub.f32 %v447, %v455
    %v457 = vmul.f32 %v456, %v456
    %v458 = vsel %vm450, %v457, 0.0
    %459 = vadd.xlane.f32.xlu0 %v458
    %v460 = vpop.xlane.xlu0 %459
    %v461 = vmul.f32 %v460, %v454
    %v462 = vadd.f32 %v461, 1e-05
    %v463 = vrsqrt.pop %v462
    %v464 = vmul.f32 %v456, %v463
    %v465 = vmax.f32 %v464, 0.0
    %v466 = vld [vmem:[%s9] sm:$0x1]
    %v468 = vlaneseq
    %v469 = vshrl.u32 %v468, 7
    %v470 = vsub.s32 0, %v469
    %v471 = vrot.slane %v466, %v470
    %v473 = vmul.f32 %v465, %v471
    %v474 = vsel %vm450, %v473, 0.0
    %475 = vadd.xlane.f32.xlu0 %v474
    %v476 = vpop.xlane.xlu0 %475
    %v477 = vld [vmem:[#allocation3] sm:$0x1]
    %v479 = vlaneseq
    %v480 = vshrl.u32 %v479, 7
    %v481 = vsub.s32 0, %v480
    %v482 = vrot.slane %v477, %v481
    %v484 = vadd.f32 %v476, %v482
    %486 = vset.pattern.permute.xlu0 0
    %487 = vperm.xlu0 %486, %v484
    %v488 = vpop.permute.xlu0 %487
    %490 = vst [vmem:[#allocation4] sm:$0xff] %v488
    // Predicated region
    $region46: #{tpu_custom_call.1} parent=1 // pred_check
      _
    $region47: #{tpu_custom_call.1} parent=1 // pred_check_branch
      %492 = sbr.rel (0) target = $region49
    $region48: #{tpu_custom_call.1} parent=1 // pred_region
      %s494 = ssub.s32 128, 128
      %495 = vsyncadd [#allocation5], %s494
      %s497 = sshll.u32 [#allocation4], 4
      %s498 = int_to_ptr.vmem [resolvable:$true] %s497
      %500 = dma.vmem_to_hbm [thread:$0]  %s498, 128, %s11, [#allocation5]
    $region49: #{tpu_custom_call.1} parent=1 // pred_fallthru
      _
    // Predicated region
    $region50: #{tpu_custom_call.1} parent=1 // pred_check
      _
    $region51: #{tpu_custom_call.1} parent=1 // pred_check_branch
      %502 = sbr.rel (0) target = $region53
    $region52: #{tpu_custom_call.1} parent=1 // pred_region
      %503 = dma.done [#allocation5], 128
    $region53: #{tpu_custom_call.1} parent=1 // pred_fallthru
      _
    %504 = vsyncpa [#allocation5], 1

</llo_original>
